<compile_context>
chip_gen: v6e
topology: v6e:2x2x1
jax: 0.10.0
libtpu: 0.0.40
codegen_flags: <defaults>
</compile_context>

<pallas_src>
import functools

import jax
import jax.numpy as jnp
from jax.experimental import pallas as pl
from jax.experimental.pallas import tpu as pltpu

_LANE = 128


def _cdiv(a, b):
    return (a + b - 1) // b


def _layernorm_kernel(x_ref, g_ref, b_ref, o_ref, *, eps, inv_c):
    # x_ref block: (TB, C, TL); g_ref/b_ref: (C, 1) resident across the grid.
    x = x_ref[...].astype(jnp.float32)                       # widen in-register
    mean = jnp.sum(x, axis=1, keepdims=True) * inv_c         # (TB, 1, TL)
    xc = x - mean
    var = jnp.sum(xc * xc, axis=1, keepdims=True) * inv_c    # two-pass variance
    inv = jax.lax.rsqrt(var + eps)                           # EUP slot
    g = g_ref[...].astype(jnp.float32)                       # (C, 1) broadcasts
    b = b_ref[...].astype(jnp.float32)
    o_ref[...] = (xc * inv * g + b).astype(o_ref.dtype)


def _choose_tiles(B, C, L, itemsize):
    """Pick (TB, TL, vmem_limit_bytes) so blocks are MiB-scale but pipelined
    VMEM stays within ~half of physical VMEM on the current TPU generation."""
    try:
        vmem_cap = int(pltpu.get_tpu_info().vmem_capacity_bytes)
    except Exception:
        vmem_cap = 64 * 1024 * 1024  # conservative (v7x-sized) fallback

    # Total pipelined VMEM (2x in + 2x out + params) <= ~half physical VMEM.
    vmem_limit = min(vmem_cap // 2, 64 * 1024 * 1024)
    vmem_limit = max(vmem_limit, 16 * 1024 * 1024)

    # Per-block budget: in + out, each double-buffered -> 4 blocks live.
    block_budget = int(vmem_limit * 0.75) // 4
    block_budget = max(512 * 1024, min(block_budget, 8 * 1024 * 1024))

    # Lane tile: multiple of 128, or the full (lane-sparse) L when L <= 128.
    if L <= _LANE:
        TL = L
    else:
        tl_cap = max(_LANE, (block_budget // (C * itemsize)) // _LANE * _LANE)
        TL = min(tl_cap, (L // _LANE) * _LANE)

    # Very-large-C guard: if even a single-row block approaches the limit,
    # raise the limit (bounded by physical VMEM) so double-buffering survives.
    min_block = C * TL * itemsize
    if 4 * min_block > int(vmem_limit * 0.9):
        vmem_limit = min(4 * min_block + (2 << 20), int(vmem_cap * 0.85))
        # TODO(synk): if a (1, C, 128) block still doesn't fit, split C into a
        # two-step reduction instead of relying on a near-limit block.

    # Batch tile: pack batch rows until the block is ~block_budget bytes.
    TB = max(1, min(B, block_budget // max(1, C * TL * itemsize)))

    # Keep >= ~8 grid steps (v7x two-TC parallelism + pipelining) as long as
    # blocks stay >= ~512 KiB; never shrink below that to manufacture steps.
    MIN_STEPS = 8

    def steps(tb, tl):
        return _cdiv(B, tb) * _cdiv(L, tl)

    def block_bytes(tb, tl):
        return tb * C * tl * itemsize

    while steps(TB, TL) < MIN_STEPS and TB > 1 and block_bytes(TB, TL) > (512 << 10):
        TB = max(1, TB // 2)
    while (steps(TB, TL) < MIN_STEPS and TL > _LANE
           and block_bytes(TB, TL) > (512 << 10)):
        TL = max(_LANE, (TL // 2) // _LANE * _LANE)

    return TB, TL, int(vmem_limit)


def layer_norm(x, g, b, eps=1e-5):
    """x: (B, C, L);  g, b: (1, C, 1) like the PyTorch parameters."""
    B, C, L = x.shape
    g2 = g.reshape(C, 1)
    b2 = b.reshape(C, 1)

    itemsize = jnp.dtype(x.dtype).itemsize
    TB, TL, vmem_limit = _choose_tiles(B, C, L, itemsize)
    grid = (_cdiv(B, TB), _cdiv(L, TL))

    kernel = functools.partial(_layernorm_kernel, eps=eps, inv_c=1.0 / C)

    return pl.pallas_call(
        kernel,
        out_shape=jax.ShapeDtypeStruct((B, C, L), x.dtype),
        grid=grid,
        in_specs=[
            pl.BlockSpec((TB, C, TL), lambda i, j: (i, 0, j)),
            pl.BlockSpec((C, 1), lambda i, j: (0, 0)),   # resident across grid
            pl.BlockSpec((C, 1), lambda i, j: (0, 0)),
        ],
        out_specs=pl.BlockSpec((TB, C, TL), lambda i, j: (i, 0, j)),
        compiler_params=pltpu.CompilerParams(
            dimension_semantics=("parallel", "parallel"),
            vmem_limit_bytes=vmem_limit,
        ),
    )(x, g2, b2)


def layer_norm_ref(x, g, b, eps=1e-5):
    mean = jnp.mean(x, axis=1, keepdims=True)
    var = jnp.mean((x - mean) ** 2, axis=1, keepdims=True)
    return (x - mean) / jnp.sqrt(var + eps) * g + b


if __name__ == "__main__":
    key = jax.random.PRNGKey(0)
    eps = 1e-5

    # Small NCL shape implied by the module (lane-sparse L path, TL = L).
    B, C, L = 2, 4, 16
    x = jax.random.normal(key, (B, C, L), dtype=jnp.float32)
    g = jnp.ones((1, C, 1), dtype=jnp.float32)   # matches nn.Parameter init
    b = jnp.zeros((1, C, 1), dtype=jnp.float32)

    out = jax.block_until_ready(layer_norm(x, g, b, eps=eps))
    ref = layer_norm_ref(x, g, b, eps=eps)
    assert out.shape == (B, C, L)
    assert jnp.allclose(out, ref, atol=1e-5, rtol=1e-5), "mismatch vs reference"

    # Lane-dense path (L multiple of 128) and a padded-edge-tile path
    # (L not divisible by 128, B not divisible by TB) with random g/b.
    for (B2, C2, L2) in [(2, 8, 256), (3, 8, 200)]:
        kx = jax.random.fold_in(key, L2)
        kg, kb = jax.random.split(jax.random.fold_in(key, 7))
        x2 = jax.random.normal(kx, (B2, C2, L2), dtype=jnp.float32)
        g2 = jax.random.normal(kg, (1, C2, 1), dtype=jnp.float32)
        b2 = jax.random.normal(kb, (1, C2, 1), dtype=jnp.float32)
        o2 = jax.block_until_ready(layer_norm(x2, g2, b2, eps=eps))
        r2 = layer_norm_ref(x2, g2, b2, eps=eps)
        assert o2.shape == (B2, C2, L2)
        assert jnp.allclose(o2, r2, atol=1e-4, rtol=1e-4), "mismatch vs reference"

    print("KERNEL_OK")
</pallas_src>

<mosaic_0001>
module attributes {stable_mosaic.version = 11 : i64} {
  func.func @_layernorm_kernel(%arg0: i32, %arg1: i32, %arg2: memref<2x4x16xf32, #tpu.memory_space<vmem>>, %arg3: memref<4x1xf32, #tpu.memory_space<vmem>>, %arg4: memref<4x1xf32, #tpu.memory_space<vmem>>, %arg5: memref<2x4x16xf32, #tpu.memory_space<vmem>>) attributes {dimension_semantics = [#tpu.dimension_semantics<parallel>, #tpu.dimension_semantics<parallel>], iteration_bounds = array<i64: 1, 1>, scalar_prefetch = 0 : i64, scratch_operands = 0 : i64, tpu.core_type = #tpu.core_type<tc>, window_params = [{transform_indices = @transform_0, window_bounds = array<i64: 2, 4, 16>}, {pipeline_mode = #tpu.pipeline_mode<synchronous>, transform_indices = @transform_1, window_bounds = array<i64: 4, 1>}, {pipeline_mode = #tpu.pipeline_mode<synchronous>, transform_indices = @transform_2, window_bounds = array<i64: 4, 1>}, {transform_indices = @transform_3, window_bounds = array<i64: 2, 4, 16>}]} {
    %c0 = arith.constant 0 : index
    %c0_0 = arith.constant 0 : index
    %c0_1 = arith.constant 0 : index
    %0 = vector.load %arg2[%c0, %c0_0, %c0_1] : memref<2x4x16xf32, #tpu.memory_space<vmem>>, vector<2x4x16xf32>
    %cst = arith.constant dense<0.000000e+00> : vector<2x16xf32>
    %1 = vector.multi_reduction <add>, %0, %cst [1] : vector<2x4x16xf32> to vector<2x16xf32>
    %2 = vector.shape_cast %1 : vector<2x16xf32> to vector<2x1x16xf32>
    %cst_2 = arith.constant 2.500000e-01 : f32
    %3 = vector.broadcast %cst_2 : f32 to vector<2x1x16xf32>
    %4 = arith.mulf %2, %3 : vector<2x1x16xf32>
    %5 = vector.broadcast %4 : vector<2x1x16xf32> to vector<2x4x16xf32>
    %6 = arith.subf %0, %5 : vector<2x4x16xf32>
    %7 = arith.mulf %6, %6 : vector<2x4x16xf32>
    %cst_3 = arith.constant dense<0.000000e+00> : vector<2x16xf32>
    %8 = vector.multi_reduction <add>, %7, %cst_3 [1] : vector<2x4x16xf32> to vector<2x16xf32>
    %9 = vector.shape_cast %8 : vector<2x16xf32> to vector<2x1x16xf32>
    %cst_4 = arith.constant 2.500000e-01 : f32
    %10 = vector.broadcast %cst_4 : f32 to vector<2x1x16xf32>
    %11 = arith.mulf %9, %10 : vector<2x1x16xf32>
    %cst_5 = arith.constant 9.99999974E-6 : f32
    %12 = vector.broadcast %cst_5 : f32 to vector<2x1x16xf32>
    %13 = arith.addf %11, %12 : vector<2x1x16xf32>
    %14 = math.rsqrt %13 : vector<2x1x16xf32>
    %c0_6 = arith.constant 0 : index
    %c0_7 = arith.constant 0 : index
    %15 = vector.load %arg3[%c0_6, %c0_7] : memref<4x1xf32, #tpu.memory_space<vmem>>, vector<4x1xf32>
    %c0_8 = arith.constant 0 : index
    %c0_9 = arith.constant 0 : index
    %16 = vector.load %arg4[%c0_8, %c0_9] : memref<4x1xf32, #tpu.memory_space<vmem>>, vector<4x1xf32>
    %17 = vector.broadcast %14 : vector<2x1x16xf32> to vector<2x4x16xf32>
    %18 = arith.mulf %6, %17 : vector<2x4x16xf32>
    %19 = vector.shape_cast %15 : vector<4x1xf32> to vector<1x4x1xf32>
    %20 = vector.broadcast %19 : vector<1x4x1xf32> to vector<2x4x16xf32>
    %21 = arith.mulf %18, %20 : vector<2x4x16xf32>
    %22 = vector.shape_cast %16 : vector<4x1xf32> to vector<1x4x1xf32>
    %23 = vector.broadcast %22 : vector<1x4x1xf32> to vector<2x4x16xf32>
    %24 = arith.addf %21, %23 : vector<2x4x16xf32>
    %c0_10 = arith.constant 0 : index
    %c0_11 = arith.constant 0 : index
    %c0_12 = arith.constant 0 : index
    %25 = vector.load %arg5[%c0_10, %c0_11, %c0_12] : memref<2x4x16xf32, #tpu.memory_space<vmem>>, vector<2x4x16xf32>
    tpu.vector_store %arg5[%c0_10, %c0_11, %c0_12], %24 {strides = array<i32>} : memref<2x4x16xf32, #tpu.memory_space<vmem>>, vector<2x4x16xf32>,
    return
  }
  func.func @transform_0(%arg0: i32, %arg1: i32) -> (i32, i32, i32) {
    %c0_i32 = arith.constant 0 : i32
    %c0_i32_0 = arith.constant 0 : i32
    return %arg0, %c0_i32, %arg1 : i32, i32, i32
  }
  func.func @transform_1(%arg0: i32, %arg1: i32) -> (i32, i32) {
    %c0_i32 = arith.constant 0 : i32
    %c0_i32_0 = arith.constant 0 : i32
    %c0_i32_1 = arith.constant 0 : i32
    return %c0_i32, %c0_i32_0 : i32, i32
  }
  func.func @transform_2(%arg0: i32, %arg1: i32) -> (i32, i32) {
    %c0_i32 = arith.constant 0 : i32
    %c0_i32_0 = arith.constant 0 : i32
    %c0_i32_1 = arith.constant 0 : i32
    return %c0_i32, %c0_i32_0 : i32, i32
  }
  func.func @transform_3(%arg0: i32, %arg1: i32) -> (i32, i32, i32) {
    %c0_i32 = arith.constant 0 : i32
    %c0_i32_0 = arith.constant 0 : i32
    return %arg0, %c0_i32, %arg1 : i32, i32, i32
  }
}

</mosaic_0001>

<llo_original>
// kernel: tpu_custom_call.1
$region0: #{tpu_custom_call.1}
  #allocation0 [shape = 'u32[]', space=smem, size = 0x4, offset = 0x4, fixed_abs, tag = 'smem constant byte address 0x4 - core index']
  #allocation1 [shape = 'u32[144,128]{1,0:T(1,128)}', space=vmem, size = 0x12000, scoped, tag = 'internal scratch']
  %s0 = inlined_call_operand.vmem [shape: f32[2,4,16], index: 0, kind: input, shape index: {}]
  %s1 = inlined_call_operand.vmem [shape: f32[4,1], index: 1, kind: input, shape index: {}]
  %s2 = inlined_call_operand.vmem [shape: f32[4,1], index: 2, kind: input, shape index: {}]
  %s3 = inlined_call_operand.hbm [shape: f32[2,4,16], index: 3, kind: output, shape index: {}]
  %s4 = sld [smem:[#allocation0]]
  $region22: #{tpu_custom_call.1} parent=0
    _
  %s6 = ssub.s32 1, %s4
  %s7 = scalar_select 0, %s6, %s4
  $region1: #{tpu_custom_call.1} parent=0
    #allocation2 [shape = 'u8[4096]{0}', space=vmem, size = 0x1000, scoped, tag = 'output window, operand 0, single buffered']
    #allocation3 [shape = 's32[1]{0}', space=sflag, size = 0x4, scoped, tag = 'scoped memory for tpu_custom_call.1']
    %8 = vsyncpa [#allocation3], 0
    // Predicated region
    $region2: #{tpu_custom_call.1} parent=1 // pred_check
      _
    $region3: #{tpu_custom_call.1} parent=1 // pred_check_branch
      %10 = sbr.rel (0) target = $region5
    $region4: #{tpu_custom_call.1} parent=1 // pred_region
      _
    $region5: #{tpu_custom_call.1} parent=1 // pred_fallthru
      _
    // Predicated region
    $region6: #{tpu_custom_call.1} parent=1 // pred_check
      _
    $region7: #{tpu_custom_call.1} parent=1 // pred_check_branch
      %12 = sbr.rel (0) target = $region9
    $region8: #{tpu_custom_call.1} parent=1 // pred_region
      _
    $region9: #{tpu_custom_call.1} parent=1 // pred_fallthru
      _
    // Predicated region
    $region10: #{tpu_custom_call.1} parent=1 // pred_check
      _
    $region11: #{tpu_custom_call.1} parent=1 // pred_check_branch
      %14 = sbr.rel (0) target = $region13
    $region12: #{tpu_custom_call.1} parent=1 // pred_region
      _
    $region13: #{tpu_custom_call.1} parent=1 // pred_fallthru
      _
    %v15 = vld [vmem:[%s0] sm:$0xf]
    %v16 = vld [vmem:[%s0 + $0x4] sm:$0xf]
    %vm17 = vcmask 125952
    %v18 = vsel %vm17, %v15, 0.0
    %v19 = vrot.slane %v18, 4
    %v20 = vadd.f32 %v18, %v19
    %v21 = vrot.slane %v20, 2
    %v22 = vadd.f32 %v20, %v21
    %v23 = vrot.slane %v22, 1
    %v24 = vadd.f32 %v22, %v23
    %v25 = vsel %vm17, %v16, 0.0
    %v26 = vrot.slane %v25, 4
    %v27 = vadd.f32 %v25, %v26
    %v28 = vrot.slane %v27, 2
    %v29 = vadd.f32 %v27, %v28
    %v30 = vrot.slane %v29, 1
    %v31 = vadd.f32 %v29, %v30
    %v32 = vmul.f32 %v24, 0.25
    %v33 = vmul.f32 %v31, 0.25
    %v34 = vsub.f32 %v15, %v32
    %v35 = vsub.f32 %v16, %v33
    %v36 = vmul.f32 %v34, %v34
    %v37 = vmul.f32 %v35, %v35
    %v38 = vsel %vm17, %v36, 0.0
    %v39 = vrot.slane %v38, 4
    %v40 = vadd.f32 %v38, %v39
    %v41 = vrot.slane %v40, 2
    %v42 = vadd.f32 %v40, %v41
    %v43 = vrot.slane %v42, 1
    %v44 = vadd.f32 %v42, %v43
    %v45 = vsel %vm17, %v37, 0.0
    %v46 = vrot.slane %v45, 4
    %v47 = vadd.f32 %v45, %v46
    %v48 = vrot.slane %v47, 2
    %v49 = vadd.f32 %v47, %v48
    %v50 = vrot.slane %v49, 1
    %v51 = vadd.f32 %v49, %v50
    %v52 = vmul.f32 %v44, 0.25
    %v53 = vmul.f32 %v51, 0.25
    %v54 = vadd.f32 %v52, 1e-05
    %v55 = vadd.f32 %v53, 1e-05
    %v56 = vrsqrt.pop %v54
    %v57 = vrsqrt.pop %v55
    %v58 = vld [vmem:[%s1] sm:$0xf]
    %v59 = vld [vmem:[%s2] sm:$0xf]
    %v60 = vmul.f32 %v34, %v56
    %v61 = vmul.f32 %v35, %v57
    %63 = vset.pattern.permute.xlu0 0
    %64 = vperm.xlu0 %63, %v58
    %v65 = vpop.permute.xlu0 %64
    %v67 = vmul.f32 %v60, %v65
    %v68 = vmul.f32 %v61, %v65
    %70 = vset.pattern.permute.xlu0 0
    %71 = vperm.xlu0 %70, %v59
    %v72 = vpop.permute.xlu0 %71
    %v74 = vadd.f32 %v67, %v72
    %v75 = vadd.f32 %v68, %v72
    %76 = vst.msk [vmem:[#allocation2] sm:$0xf] %vm17, %v74
    %77 = vst.msk [vmem:[#allocation2 + $0x4] sm:$0xf] %vm17, %v75
    // Predicated region
    $region14: #{tpu_custom_call.1} parent=1 // pred_check
      _
    $region15: #{tpu_custom_call.1} parent=1 // pred_check_branch
      %79 = sbr.rel (0) target = $region17
    $region16: #{tpu_custom_call.1} parent=1 // pred_region
      %s81 = ssub.s32 128, 128
      %82 = vsyncadd [#allocation3], %s81
      %s83 = sshll.u32 [#allocation2], 4
      %s84 = int_to_ptr.vmem [resolvable:$true] %s83
      %89 = dma.vmem_to_hbm [thread:$0]  %s84, 128, %s3, [#allocation3], 64, 64, 4
    $region17: #{tpu_custom_call.1} parent=1 // pred_fallthru
      _
    // Predicated region
    $region18: #{tpu_custom_call.1} parent=1 // pred_check
      _
    $region19: #{tpu_custom_call.1} parent=1 // pred_check_branch
      %91 = sbr.rel (0) target = $region21
    $region20: #{tpu_custom_call.1} parent=1 // pred_region
      %92 = dma.done [#allocation3], 128
    $region21: #{tpu_custom_call.1} parent=1 // pred_fallthru
      _
    %93 = vsyncpa [#allocation3], 1

</llo_original>
